<compile_context>
chip_gen: v7x
topology: tpu7x:2x2x1
jax: 0.10.0
libtpu: 0.0.40
codegen_flags: <defaults>
</compile_context>

<pallas_src>
import jax
import jax.numpy as jnp
from jax.experimental import pallas as pl
from jax.experimental.pallas import tpu as pltpu


def _round_up(n, m):
    return ((n + m - 1) // m) * m


# ---------------------------------------------------------------------------
# Kernel body
# ---------------------------------------------------------------------------
def _resnet_kernel(x_ref, wh_ref, bh_ref, wo_ref, bo_ref, o_ref):
    # x_ref : (TB, Hp)     f32   batch tile of activations (lane-padded)
    # wh_ref: (L, Hp, Hp)  bf16  stacked hidden weights (pre-transposed, padded)
    # bh_ref: (L, 1, Hp)   f32   stacked hidden biases (padded)
    # wo_ref: (Hp, Op)     bf16  output weight (pre-transposed, padded)
    # bo_ref: (1, Op)      f32   output bias (padded)
    # o_ref : (TB, Op)     f32   result tile
    x = x_ref[...].astype(jnp.float32)
    n_layers = wh_ref.shape[0]
    # n_layers is small and static -> unrolled Python loop keeps the MXU hot.
    # TODO(synk): for L > ~4 or Hp >= ~2048, switch to lax.fori_loop over L and
    # chunk the N (output-feature) dimension of each matmul in ~512-wide tiles
    # to bound vreg/VMEM live ranges instead of fully unrolling.
    for l in range(n_layers):
        w = wh_ref[l]                                    # (Hp, Hp) bf16
        b = bh_ref[l]                                    # (1, Hp)  f32
        y = jnp.dot(x.astype(jnp.bfloat16), w,
                    preferred_element_type=jnp.float32) + b
        x = jnp.maximum(y, 0.0) + x                      # relu + residual (f32)
    out = jnp.dot(x.astype(jnp.bfloat16), wo_ref[...],
                  preferred_element_type=jnp.float32) + bo_ref[...]
    o_ref[...] = out.astype(o_ref.dtype)


# ---------------------------------------------------------------------------
# One-time parameter preparation (pad / transpose / cast) — call ONCE.
# ---------------------------------------------------------------------------
def prepare_resnet_params(w_hidden, b_hidden, w_out, b_out, *,
                          weight_dtype=jnp.bfloat16):
    """Accepts PyTorch nn.Linear layout and returns padded, kernel-ready params.

    w_hidden: (L, H, H)  per-layer (out_features, in_features)
    b_hidden: (L, H)
    w_out:    (O, H)     (out_features, in_features)
    b_out:    (O,)
    weight_dtype: bf16 by default (MXU-native; documented precision trade-off
    vs. the f32 PyTorch reference).  Pass jnp.float32 for bit-closer results.
    """
    L, h_out, h_in = w_hidden.shape
    assert h_out == h_in, "Res_Net residual requires input_size == hidden_size"
    H = h_in
    O = w_out.shape[0]
    assert w_out.shape == (O, H)
    assert b_hidden.shape == (L, H)
    assert b_out.shape == (O,)

    Hp = _round_up(H, 128)
    Op = _round_up(O, 128)
    f32 = jnp.float32

    # Pre-transpose to (in_features, out_features) so the kernel computes x @ W
    # directly (== PyTorch's x @ W.T), then zero-pad to lane-dense shapes.
    wh_t = jnp.swapaxes(w_hidden, 1, 2).astype(weight_dtype)
    wh_p = jnp.zeros((L, Hp, Hp), weight_dtype).at[:, :H, :H].set(wh_t)
    bh_p = jnp.zeros((L, 1, Hp), f32).at[:, 0, :H].set(b_hidden.astype(f32))
    wo_p = jnp.zeros((Hp, Op), weight_dtype).at[:H, :O].set(
        w_out.T.astype(weight_dtype))
    bo_p = jnp.zeros((1, Op), f32).at[0, :O].set(b_out.astype(f32))
    wh_p, bh_p, wo_p, bo_p = jax.block_until_ready((wh_p, bh_p, wo_p, bo_p))

    return {"w_hidden": wh_p, "b_hidden": bh_p, "w_out": wo_p, "b_out": bo_p,
            "H": H, "O": O, "Hp": Hp, "Op": Op, "L": L}


# ---------------------------------------------------------------------------
# pallas_call builder (cached per static configuration)
# ---------------------------------------------------------------------------
_pallas_fn_cache = {}
_single_buffer_supported = True  # flipped if pl.Buffered(1) is rejected


def _pick_batch_tile(B):
    Bp8 = _round_up(B, 8)
    if Bp8 <= 256:
        return Bp8          # single tile, no 128-row padding waste for small B
    # Large batch: prefer 256-row tiles (fills 256x256 MXU on v6e/v7x, halves
    # per-step overhead) unless 128-row tiles waste strictly less padding.
    if _round_up(Bp8, 256) - Bp8 <= _round_up(Bp8, 128) - Bp8:
        return 256
    return 128


def _get_pallas_fn(L, Hp, Op, TB, n_tiles, weight_dtype, single_buffer):
    key = (L, Hp, Op, TB, n_tiles, jnp.dtype(weight_dtype).name, single_buffer)
    fn = _pallas_fn_cache.get(key)
    if fn is not None:
        return fn

    Bp = TB * n_tiles
    wbytes = jnp.dtype(weight_dtype).itemsize
    resident_bytes = (L * Hp * Hp * wbytes + L * Hp * 4
                      + Hp * Op * wbytes + Op * 4)
    tile_bytes = 2 * TB * Hp * 4 + 2 * TB * Op * 4   # double-buffered act/out
    temps_bytes = 4 * TB * Hp * 4                    # in-kernel f32/bf16 temporaries
    vmem_needed = resident_bytes + tile_bytes + temps_bytes
    if vmem_needed > (48 << 20):
        # TODO(synk): for large L*Hp^2 (esp. v7x 64 MiB VMEM), stream hidden
        # weights layer-by-layer (memory_space=pl.ANY + manual double-buffered
        # make_async_copy over L) instead of keeping the whole stack resident.
        raise NotImplementedError(
            f"resident weight stack needs ~{vmem_needed >> 20} MiB VMEM; "
            "layer streaming not implemented")
    # Headroom for the double-buffered-weights fallback; clamp under v7x's
    # 64 MiB per-TC physical VMEM, floor above v5e's 16 MiB scoped default.
    vmem_limit = int(min(max(2 * vmem_needed, 32 << 20), 60 << 20))

    flops = 2 * Bp * Hp * Hp * L + 2 * Bp * Hp * Op
    bytes_accessed = (Bp * Hp * 4 + resident_bytes + Bp * Op * 4)

    resident_kw = {"pipeline_mode": pl.Buffered(1)} if single_buffer else {}

    fn = pl.pallas_call(
        _resnet_kernel,
        out_shape=jax.ShapeDtypeStruct((Bp, Op), jnp.float32),
        grid=(n_tiles,),
        in_specs=[
            # batch-tiled activations (double-buffered by default -> pipelined)
            pl.BlockSpec((TB, Hp), lambda i: (i, 0)),
            # weights / biases stay resident across batch tiles (DMA'd once)
            pl.BlockSpec((L, Hp, Hp), lambda i: (0, 0, 0), **resident_kw),
            pl.BlockSpec((L, 1, Hp), lambda i: (0, 0, 0), **resident_kw),
            pl.BlockSpec((Hp, Op), lambda i: (0, 0), **resident_kw),
            pl.BlockSpec((1, Op), lambda i: (0, 0), **resident_kw),
        ],
        out_specs=pl.BlockSpec((TB, Op), lambda i: (i, 0)),
        compiler_params=pltpu.CompilerParams(
            # Batch tiles are independent -> shard across TCs on v7x megacore.
            dimension_semantics=("parallel",),
            vmem_limit_bytes=vmem_limit,
        ),
        cost_estimate=pl.CostEstimate(
            flops=flops, transcendentals=0, bytes_accessed=bytes_accessed),
    )
    _pallas_fn_cache[key] = fn
    return fn


# ---------------------------------------------------------------------------
# Forward wrapper
# ---------------------------------------------------------------------------
def res_net_forward(x, params):
    """x: (B, H) activations; params: output of prepare_resnet_params()."""
    global _single_buffer_supported
    B, H = x.shape
    assert H == params["H"], "input feature size mismatch"
    Hp, Op, L, O = params["Hp"], params["Op"], params["L"], params["O"]
    weight_dtype = params["w_hidden"].dtype

    TB = _pick_batch_tile(B)
    Bp = _round_up(B, TB)
    n_tiles = Bp // TB

    if Bp == B and Hp == H:
        x_p = x.astype(jnp.float32)
    else:
        x_p = jnp.zeros((Bp, Hp), jnp.float32).at[:B, :H].set(
            x.astype(jnp.float32))

    args = (x_p, params["w_hidden"], params["b_hidden"],
            params["w_out"], params["b_out"])

    modes = (True, False) if _single_buffer_supported else (False,)
    out_p = None
    for single in modes:
        try:
            fn = _get_pallas_fn(L, Hp, Op, TB, n_tiles, weight_dtype, single)
            out_p = fn(*args)
            break
        except NotImplementedError:
            raise
        except Exception:
            if not single:
                raise
            # pipeline_mode=pl.Buffered(1) unsupported on this JAX version;
            # fall back to default double-buffered resident weights.
            _single_buffer_supported = False

    # Slice the real rows/columns back out (padded lanes are exact zeros).
    return out_p[:B, :O].astype(x.dtype)


# ---------------------------------------------------------------------------
# Pure-JAX f32 reference (PyTorch nn.Linear layout) and self-test
# ---------------------------------------------------------------------------
def _reference(x, w_hidden, b_hidden, w_out, b_out):
    x = x.astype(jnp.float32)
    for l in range(w_hidden.shape[0]):
        pre_x = x
        x = jax.nn.relu(x @ w_hidden[l].T + b_hidden[l]) + pre_x
    return x @ w_out.T + b_out


if __name__ == "__main__":
    # Module-consistent small shapes:
    #   input_size = hidden_size = 32 (required by the residual add),
    #   output_size = 16, two hidden layers, batch = 8.
    batch, hidden, output, n_layers = 8, 32, 16, 2

    key = jax.random.PRNGKey(0)
    kx, kw, kb, kwo, kbo = jax.random.split(key, 5)

    x = jax.random.normal(kx, (batch, hidden), dtype=jnp.float32)
    # PyTorch nn.Linear layout: weight (out_features, in_features), bias (out,).
    w_hidden = jax.random.normal(kw, (n_layers, hidden, hidden),
                                 dtype=jnp.float32) * (1.0 / jnp.sqrt(hidden))
    b_hidden = jax.random.normal(kb, (n_layers, hidden), dtype=jnp.float32) * 0.01
    w_out = jax.random.normal(kwo, (output, hidden),
                              dtype=jnp.float32) * (1.0 / jnp.sqrt(hidden))
    b_out = jax.random.normal(kbo, (output,), dtype=jnp.float32) * 0.01

    # Pad / transpose / cast parameters ONCE (hoisted out of the forward path).
    params = prepare_resnet_params(w_hidden, b_hidden, w_out, b_out)

    out = res_net_forward(x, params)
    out = jax.block_until_ready(out)

    ref = _reference(x, w_hidden, b_hidden, w_out, b_out)
    assert out.shape == (batch, output)
    # bf16 weights with f32 accumulation -> loosened tolerance vs pure-f32 ref.
    assert jnp.allclose(out, ref, atol=3e-2, rtol=3e-2), \
        "mismatch vs pure-JAX reference"

    print("KERNEL_OK")
</pallas_src>

<mosaic_0001>
module attributes {stable_mosaic.version = 11 : i64} {
  func.func @_resnet_kernel(%arg0: i32, %arg1: memref<8x128xf32, #tpu.memory_space<vmem>>, %arg2: memref<2x128x128xbf16, #tpu.memory_space<vmem>>, %arg3: memref<2x1x128xf32, #tpu.memory_space<vmem>>, %arg4: memref<128x128xbf16, #tpu.memory_space<vmem>>, %arg5: memref<1x128xf32, #tpu.memory_space<vmem>>, %arg6: memref<8x128xf32, #tpu.memory_space<vmem>>) attributes {dimension_semantics = [#tpu.dimension_semantics<parallel>], iteration_bounds = array<i64: 1>, scalar_prefetch = 0 : i64, scratch_operands = 0 : i64, tpu.core_type = #tpu.core_type<tc>, window_params = [{transform_indices = @transform_0, window_bounds = array<i64: 8, 128>}, {pipeline_mode = #tpu.pipeline_mode<synchronous>, transform_indices = @transform_1, window_bounds = array<i64: 2, 128, 128>}, {pipeline_mode = #tpu.pipeline_mode<synchronous>, transform_indices = @transform_2, window_bounds = array<i64: 2, 1, 128>}, {pipeline_mode = #tpu.pipeline_mode<synchronous>, transform_indices = @transform_3, window_bounds = array<i64: 128, 128>}, {pipeline_mode = #tpu.pipeline_mode<synchronous>, transform_indices = @transform_4, window_bounds = array<i64: 1, 128>}, {transform_indices = @transform_5, window_bounds = array<i64: 8, 128>}]} {
    %c0 = arith.constant 0 : index
    %c0_0 = arith.constant 0 : index
    %0 = vector.load %arg1[%c0, %c0_0] : memref<8x128xf32, #tpu.memory_space<vmem>>, vector<8x128xf32>
    %c0_1 = arith.constant 0 : index
    %c0_2 = arith.constant 0 : index
    %c0_3 = arith.constant 0 : index
    %1 = vector.load %arg2[%c0_1, %c0_2, %c0_3] : memref<2x128x128xbf16, #tpu.memory_space<vmem>>, vector<1x128x128xbf16>
    %2 = vector.shape_cast %1 : vector<1x128x128xbf16> to vector<128x128xbf16>
    %c0_4 = arith.constant 0 : index
    %c0_5 = arith.constant 0 : index
    %c0_6 = arith.constant 0 : index
    %3 = vector.load %arg3[%c0_4, %c0_5, %c0_6] : memref<2x1x128xf32, #tpu.memory_space<vmem>>, vector<1x1x128xf32>
    %4 = vector.shape_cast %3 : vector<1x1x128xf32> to vector<1x128xf32>
    %5 = arith.truncf %0 : vector<8x128xf32> to vector<8x128xbf16>
    %cst = arith.constant dense<0.000000e+00> : vector<8x128xf32>
    %6 = tpu.matmul %5, %2, %cst {dimension_numbers = #tpu.dot_dimension_numbers<[1], [0], [0], [1], [0, 0, 1, 1], [], []>} : vector<8x128xbf16>, vector<128x128xbf16>, vector<8x128xf32> -> vector<8x128xf32>
    %7 = vector.broadcast %4 : vector<1x128xf32> to vector<8x128xf32>
    %8 = arith.addf %6, %7 : vector<8x128xf32>
    %cst_7 = arith.constant 0.000000e+00 : f32
    %9 = vector.broadcast %cst_7 : f32 to vector<8x128xf32>
    %10 = arith.maximumf %8, %9 : vector<8x128xf32>
    %11 = arith.addf %10, %0 : vector<8x128xf32>
    %c1 = arith.constant 1 : index
    %c0_8 = arith.constant 0 : index
    %c0_9 = arith.constant 0 : index
    %12 = vector.load %arg2[%c1, %c0_8, %c0_9] : memref<2x128x128xbf16, #tpu.memory_space<vmem>>, vector<1x128x128xbf16>
    %13 = vector.shape_cast %12 : vector<1x128x128xbf16> to vector<128x128xbf16>
    %c1_10 = arith.constant 1 : index
    %c0_11 = arith.constant 0 : index
    %c0_12 = arith.constant 0 : index
    %14 = vector.load %arg3[%c1_10, %c0_11, %c0_12] : memref<2x1x128xf32, #tpu.memory_space<vmem>>, vector<1x1x128xf32>
    %15 = vector.shape_cast %14 : vector<1x1x128xf32> to vector<1x128xf32>
    %16 = arith.truncf %11 : vector<8x128xf32> to vector<8x128xbf16>
    %cst_13 = arith.constant dense<0.000000e+00> : vector<8x128xf32>
    %17 = tpu.matmul %16, %13, %cst_13 {dimension_numbers = #tpu.dot_dimension_numbers<[1], [0], [0], [1], [0, 0, 1, 1], [], []>} : vector<8x128xbf16>, vector<128x128xbf16>, vector<8x128xf32> -> vector<8x128xf32>
    %18 = vector.broadcast %15 : vector<1x128xf32> to vector<8x128xf32>
    %19 = arith.addf %17, %18 : vector<8x128xf32>
    %cst_14 = arith.constant 0.000000e+00 : f32
    %20 = vector.broadcast %cst_14 : f32 to vector<8x128xf32>
    %21 = arith.maximumf %19, %20 : vector<8x128xf32>
    %22 = arith.addf %21, %11 : vector<8x128xf32>
    %23 = arith.truncf %22 : vector<8x128xf32> to vector<8x128xbf16>
    %c0_15 = arith.constant 0 : index
    %c0_16 = arith.constant 0 : index
    %24 = vector.load %arg4[%c0_15, %c0_16] : memref<128x128xbf16, #tpu.memory_space<vmem>>, vector<128x128xbf16>
    %cst_17 = arith.constant dense<0.000000e+00> : vector<8x128xf32>
    %25 = tpu.matmul %23, %24, %cst_17 {dimension_numbers = #tpu.dot_dimension_numbers<[1], [0], [0], [1], [0, 0, 1, 1], [], []>} : vector<8x128xbf16>, vector<128x128xbf16>, vector<8x128xf32> -> vector<8x128xf32>
    %c0_18 = arith.constant 0 : index
    %c0_19 = arith.constant 0 : index
    %26 = vector.load %arg5[%c0_18, %c0_19] : memref<1x128xf32, #tpu.memory_space<vmem>>, vector<1x128xf32>
    %27 = vector.broadcast %26 : vector<1x128xf32> to vector<8x128xf32>
    %28 = arith.addf %25, %27 : vector<8x128xf32>
    %c0_20 = arith.constant 0 : index
    %c0_21 = arith.constant 0 : index
    %29 = vector.load %arg6[%c0_20, %c0_21] : memref<8x128xf32, #tpu.memory_space<vmem>>, vector<8x128xf32>
    tpu.vector_store %arg6[%c0_20, %c0_21], %28 {strides = array<i32>} : memref<8x128xf32, #tpu.memory_space<vmem>>, vector<8x128xf32>,
    return
  }
  func.func @transform_0(%arg0: i32) -> (i32, i32) {
    %c0_i32 = arith.constant 0 : i32
    %c0_i32_0 = arith.constant 0 : i32
    return %arg0, %c0_i32 : i32, i32
  }
  func.func @transform_1(%arg0: i32) -> (i32, i32, i32) {
    %c0_i32 = arith.constant 0 : i32
    %c0_i32_0 = arith.constant 0 : i32
    %c0_i32_1 = arith.constant 0 : i32
    %c0_i32_2 = arith.constant 0 : i32
    return %c0_i32, %c0_i32_0, %c0_i32_1 : i32, i32, i32
  }
  func.func @transform_2(%arg0: i32) -> (i32, i32, i32) {
    %c0_i32 = arith.constant 0 : i32
    %c0_i32_0 = arith.constant 0 : i32
    %c0_i32_1 = arith.constant 0 : i32
    %c0_i32_2 = arith.constant 0 : i32
    return %c0_i32, %c0_i32_0, %c0_i32_1 : i32, i32, i32
  }
  func.func @transform_3(%arg0: i32) -> (i32, i32) {
    %c0_i32 = arith.constant 0 : i32
    %c0_i32_0 = arith.constant 0 : i32
    %c0_i32_1 = arith.constant 0 : i32
    return %c0_i32, %c0_i32_0 : i32, i32
  }
  func.func @transform_4(%arg0: i32) -> (i32, i32) {
    %c0_i32 = arith.constant 0 : i32
    %c0_i32_0 = arith.constant 0 : i32
    %c0_i32_1 = arith.constant 0 : i32
    return %c0_i32, %c0_i32_0 : i32, i32
  }
  func.func @transform_5(%arg0: i32) -> (i32, i32) {
    %c0_i32 = arith.constant 0 : i32
    %c0_i32_0 = arith.constant 0 : i32
    return %arg0, %c0_i32 : i32, i32
  }
}

module attributes {stable_mosaic.version = 11 : i64} {
  func.func @_resnet_kernel(%arg0: i32, %arg1: memref<8x128xf32, #tpu.memory_space<vmem>>, %arg2: memref<2x128x128xbf16, #tpu.memory_space<vmem>>, %arg3: memref<2x1x128xf32, #tpu.memory_space<vmem>>, %arg4: memref<128x128xbf16, #tpu.memory_space<vmem>>, %arg5: memref<1x128xf32, #tpu.memory_space<vmem>>, %arg6: memref<8x128xf32, #tpu.memory_space<vmem>>) attributes {dimension_semantics = [#tpu.dimension_semantics<parallel>], iteration_bounds = array<i64: 1>, scalar_prefetch = 0 : i64, scratch_operands = 0 : i64, tpu.core_type = #tpu.core_type<tc>, window_params = [{transform_indices = @transform_0, window_bounds = array<i64: 8, 128>}, {pipeline_mode = #tpu.pipeline_mode<synchronous>, transform_indices = @transform_1, window_bounds = array<i64: 2, 128, 128>}, {pipeline_mode = #tpu.pipeline_mode<synchronous>, transform_indices = @transform_2, window_bounds = array<i64: 2, 1, 128>}, {pipeline_mode = #tpu.pipeline_mode<synchronous>, transform_indices = @transform_3, window_bounds = array<i64: 128, 128>}, {pipeline_mode = #tpu.pipeline_mode<synchronous>, transform_indices = @transform_4, window_bounds = array<i64: 1, 128>}, {transform_indices = @transform_5, window_bounds = array<i64: 8, 128>}]} {
    %c0 = arith.constant 0 : index
    %c0_0 = arith.constant 0 : index
    %0 = vector.load %arg1[%c0, %c0_0] : memref<8x128xf32, #tpu.memory_space<vmem>>, vector<8x128xf32>
    %c0_1 = arith.constant 0 : index
    %c0_2 = arith.constant 0 : index
    %c0_3 = arith.constant 0 : index
    %1 = vector.load %arg2[%c0_1, %c0_2, %c0_3] : memref<2x128x128xbf16, #tpu.memory_space<vmem>>, vector<1x128x128xbf16>
    %2 = vector.shape_cast %1 : vector<1x128x128xbf16> to vector<128x128xbf16>
    %c0_4 = arith.constant 0 : index
    %c0_5 = arith.constant 0 : index
    %c0_6 = arith.constant 0 : index
    %3 = vector.load %arg3[%c0_4, %c0_5, %c0_6] : memref<2x1x128xf32, #tpu.memory_space<vmem>>, vector<1x1x128xf32>
    %4 = vector.shape_cast %3 : vector<1x1x128xf32> to vector<1x128xf32>
    %5 = arith.truncf %0 : vector<8x128xf32> to vector<8x128xbf16>
    %cst = arith.constant dense<0.000000e+00> : vector<8x128xf32>
    %6 = tpu.matmul %5, %2, %cst {dimension_numbers = #tpu.dot_dimension_numbers<[1], [0], [0], [1], [0, 0, 1, 1], [], []>} : vector<8x128xbf16>, vector<128x128xbf16>, vector<8x128xf32> -> vector<8x128xf32>
    %7 = vector.broadcast %4 : vector<1x128xf32> to vector<8x128xf32>
    %8 = arith.addf %6, %7 : vector<8x128xf32>
    %cst_7 = arith.constant 0.000000e+00 : f32
    %9 = vector.broadcast %cst_7 : f32 to vector<8x128xf32>
    %10 = arith.maximumf %8, %9 : vector<8x128xf32>
    %11 = arith.addf %10, %0 : vector<8x128xf32>
    %c1 = arith.constant 1 : index
    %c0_8 = arith.constant 0 : index
    %c0_9 = arith.constant 0 : index
    %12 = vector.load %arg2[%c1, %c0_8, %c0_9] : memref<2x128x128xbf16, #tpu.memory_space<vmem>>, vector<1x128x128xbf16>
    %13 = vector.shape_cast %12 : vector<1x128x128xbf16> to vector<128x128xbf16>
    %c1_10 = arith.constant 1 : index
    %c0_11 = arith.constant 0 : index
    %c0_12 = arith.constant 0 : index
    %14 = vector.load %arg3[%c1_10, %c0_11, %c0_12] : memref<2x1x128xf32, #tpu.memory_space<vmem>>, vector<1x1x128xf32>
    %15 = vector.shape_cast %14 : vector<1x1x128xf32> to vector<1x128xf32>
    %16 = arith.truncf %11 : vector<8x128xf32> to vector<8x128xbf16>
    %cst_13 = arith.constant dense<0.000000e+00> : vector<8x128xf32>
    %17 = tpu.matmul %16, %13, %cst_13 {dimension_numbers = #tpu.dot_dimension_numbers<[1], [0], [0], [1], [0, 0, 1, 1], [], []>} : vector<8x128xbf16>, vector<128x128xbf16>, vector<8x128xf32> -> vector<8x128xf32>
    %18 = vector.broadcast %15 : vector<1x128xf32> to vector<8x128xf32>
    %19 = arith.addf %17, %18 : vector<8x128xf32>
    %cst_14 = arith.constant 0.000000e+00 : f32
    %20 = vector.broadcast %cst_14 : f32 to vector<8x128xf32>
    %21 = arith.maximumf %19, %20 : vector<8x128xf32>
    %22 = arith.addf %21, %11 : vector<8x128xf32>
    %23 = arith.truncf %22 : vector<8x128xf32> to vector<8x128xbf16>
    %c0_15 = arith.constant 0 : index
    %c0_16 = arith.constant 0 : index
    %24 = vector.load %arg4[%c0_15, %c0_16] : memref<128x128xbf16, #tpu.memory_space<vmem>>, vector<128x128xbf16>
    %cst_17 = arith.constant dense<0.000000e+00> : vector<8x128xf32>
    %25 = tpu.matmul %23, %24, %cst_17 {dimension_numbers = #tpu.dot_dimension_numbers<[1], [0], [0], [1], [0, 0, 1, 1], [], []>} : vector<8x128xbf16>, vector<128x128xbf16>, vector<8x128xf32> -> vector<8x128xf32>
    %c0_18 = arith.constant 0 : index
    %c0_19 = arith.constant 0 : index
    %26 = vector.load %arg5[%c0_18, %c0_19] : memref<1x128xf32, #tpu.memory_space<vmem>>, vector<1x128xf32>
    %27 = vector.broadcast %26 : vector<1x128xf32> to vector<8x128xf32>
    %28 = arith.addf %25, %27 : vector<8x128xf32>
    %c0_20 = arith.constant 0 : index
    %c0_21 = arith.constant 0 : index
    %29 = vector.load %arg6[%c0_20, %c0_21] : memref<8x128xf32, #tpu.memory_space<vmem>>, vector<8x128xf32>
    tpu.vector_store %arg6[%c0_20, %c0_21], %28 {strides = array<i32>} : memref<8x128xf32, #tpu.memory_space<vmem>>, vector<8x128xf32>,
    return
  }
  func.func @transform_0(%arg0: i32) -> (i32, i32) {
    %c0_i32 = arith.constant 0 : i32
    %c0_i32_0 = arith.constant 0 : i32
    return %arg0, %c0_i32 : i32, i32
  }
  func.func @transform_1(%arg0: i32) -> (i32, i32, i32) {
    %c0_i32 = arith.constant 0 : i32
    %c0_i32_0 = arith.constant 0 : i32
    %c0_i32_1 = arith.constant 0 : i32
    %c0_i32_2 = arith.constant 0 : i32
    return %c0_i32, %c0_i32_0, %c0_i32_1 : i32, i32, i32
  }
  func.func @transform_2(%arg0: i32) -> (i32, i32, i32) {
    %c0_i32 = arith.constant 0 : i32
    %c0_i32_0 = arith.constant 0 : i32
    %c0_i32_1 = arith.constant 0 : i32
    %c0_i32_2 = arith.constant 0 : i32
    return %c0_i32, %c0_i32_0, %c0_i32_1 : i32, i32, i32
  }
  func.func @transform_3(%arg0: i32) -> (i32, i32) {
    %c0_i32 = arith.constant 0 : i32
    %c0_i32_0 = arith.constant 0 : i32
    %c0_i32_1 = arith.constant 0 : i32
    return %c0_i32, %c0_i32_0 : i32, i32
  }
  func.func @transform_4(%arg0: i32) -> (i32, i32) {
    %c0_i32 = arith.constant 0 : i32
    %c0_i32_0 = arith.constant 0 : i32
    %c0_i32_1 = arith.constant 0 : i32
    return %c0_i32, %c0_i32_0 : i32, i32
  }
  func.func @transform_5(%arg0: i32) -> (i32, i32) {
    %c0_i32 = arith.constant 0 : i32
    %c0_i32_0 = arith.constant 0 : i32
    return %arg0, %c0_i32 : i32, i32
  }
}

</mosaic_0001>

<llo_original>
// kernel: tpu_custom_call.1
$region0: #{tpu_custom_call.1}
  #allocation0 [shape = 'u32[]', space=smem, size = 0x4, offset = 0x4, fixed_abs, tag = 'smem constant byte address 0x4 - core index']
  #allocation1 [shape = 'u32[144,128]{1,0:T(1,128)}', space=vmem, size = 0x12000, scoped, tag = 'internal scratch']
  %s0 = inlined_call_operand.hbm [shape: f32[8,128], index: 0, kind: input, shape index: {}]
  %s1 = inlined_call_operand.hbm [shape: bf16[2,128,128], index: 1, kind: input, shape index: {}]
  %s2 = inlined_call_operand.vmem [shape: f32[2,1,128], index: 2, kind: input, shape index: {}]
  %s3 = inlined_call_operand.hbm [shape: bf16[128,128], index: 3, kind: input, shape index: {}]
  %s4 = inlined_call_operand.vmem [shape: f32[1,128], index: 4, kind: input, shape index: {}]
  %s5 = inlined_call_operand.hbm [shape: f32[8,128], index: 5, kind: output, shape index: {}]
  %s6 = sld [smem:[#allocation0]]
  $region42: #{tpu_custom_call.1} parent=0
    _
  %s8 = ssub.s32 1, %s6
  %s9 = scalar_select 0, %s8, %s6
  $region1: #{tpu_custom_call.1} parent=0
    #allocation2 [shape = 'u8[4096]{0}', space=vmem, size = 0x1000, scoped, tag = 'input window, operand 0, single buffered']
    #allocation3 [shape = 's32[1]{0}', space=sflag, size = 0x4, scoped, tag = 'scoped memory for tpu_custom_call.1']
    #allocation4 [shape = 's32[1]{0}', space=sflag, size = 0x4, scoped, tag = 'scoped memory for tpu_custom_call.1']
    #allocation5 [shape = 'u8[65536]{0}', space=vmem, size = 0x10000, scoped, tag = 'input window, operand 1, single buffered']
    #allocation6 [shape = 's32[1]{0}', space=sflag, size = 0x4, scoped, tag = 'scoped memory for tpu_custom_call.1']
    #allocation7 [shape = 'u8[32768]{0}', space=vmem, size = 0x8000, scoped, tag = 'input window, operand 3, single buffered']
    #allocation8 [shape = 'u8[4096]{0}', space=vmem, size = 0x1000, scoped, tag = 'output window, operand 0, single buffered']
    %10 = vsyncpa [#allocation3], 0
    %11 = vsyncpa [#allocation6], 0
    %12 = vsyncpa [#allocation4], 0
    // Predicated region
    $region2: #{tpu_custom_call.1} parent=1 // pred_check
      _
    $region3: #{tpu_custom_call.1} parent=1 // pred_check_branch
      %14 = sbr.rel (0) target = $region5
    $region4: #{tpu_custom_call.1} parent=1 // pred_region
      %s16 = ssub.s32 128, 128
      %17 = vsyncadd [#allocation3], %s16
      %s19 = sshll.u32 [#allocation2], 4
      %s20 = int_to_ptr.vmem [resolvable:$true] %s19
      %22 = dma.hbm_to_vmem [thread:$0]  %s0, 128, %s20, [#allocation3]
    $region5: #{tpu_custom_call.1} parent=1 // pred_fallthru
      _
    // Predicated region
    $region6: #{tpu_custom_call.1} parent=1 // pred_check
      _
    $region7: #{tpu_custom_call.1} parent=1 // pred_check_branch
      %24 = sbr.rel (0) target = $region9
    $region8: #{tpu_custom_call.1} parent=1 // pred_region
      %s26 = ssub.s32 2048, 2048
      %27 = vsyncadd [#allocation6], %s26
      %s28 = sshll.u32 [#allocation5], 4
      %s29 = int_to_ptr.vmem [resolvable:$true] %s28
      %34 = dma.hbm_to_vmem [thread:$0]  %s1, 2048, %s29, [#allocation6], 64, 64, 4
    $region9: #{tpu_custom_call.1} parent=1 // pred_fallthru
      _
    // Predicated region
    $region10: #{tpu_custom_call.1} parent=1 // pred_check
      _
    $region11: #{tpu_custom_call.1} parent=1 // pred_check_branch
      %36 = sbr.rel (0) target = $region13
    $region12: #{tpu_custom_call.1} parent=1 // pred_region
      _
    $region13: #{tpu_custom_call.1} parent=1 // pred_fallthru
      _
    // Predicated region
    $region14: #{tpu_custom_call.1} parent=1 // pred_check
      _
    $region15: #{tpu_custom_call.1} parent=1 // pred_check_branch
      %38 = sbr.rel (0) target = $region17
    $region16: #{tpu_custom_call.1} parent=1 // pred_region
      %s40 = ssub.s32 1024, 1024
      %41 = vsyncadd [#allocation6], %s40
      %s42 = sshll.u32 [#allocation7], 4
      %s43 = int_to_ptr.vmem [resolvable:$true] %s42
      %48 = dma.hbm_to_vmem [thread:$0]  %s3, 1024, %s43, [#allocation6], 64, 64, 4
    $region17: #{tpu_custom_call.1} parent=1 // pred_fallthru
      _
    // Predicated region
    $region18: #{tpu_custom_call.1} parent=1 // pred_check
      _
    $region19: #{tpu_custom_call.1} parent=1 // pred_check_branch
      %50 = sbr.rel (0) target = $region21
    $region20: #{tpu_custom_call.1} parent=1 // pred_region
      _
    $region21: #{tpu_custom_call.1} parent=1 // pred_fallthru
      _
    // Predicated region
    $region22: #{tpu_custom_call.1} parent=1 // pred_check
      _
    $region23: #{tpu_custom_call.1} parent=1 // pred_check_branch
      %52 = sbr.rel (0) target = $region25
    $region24: #{tpu_custom_call.1} parent=1 // pred_region
      %53 = dma.done [#allocation3], 128
    $region25: #{tpu_custom_call.1} parent=1 // pred_fallthru
      _
    // Predicated region
    $region26: #{tpu_custom_call.1} parent=1 // pred_check
      _
    $region27: #{tpu_custom_call.1} parent=1 // pred_check_branch
      %55 = sbr.rel (0) target = $region29
    $region28: #{tpu_custom_call.1} parent=1 // pred_region
      %56 = dma.done [#allocation6], 2048
    $region29: #{tpu_custom_call.1} parent=1 // pred_fallthru
      _
    // Predicated region
    $region30: #{tpu_custom_call.1} parent=1 // pred_check
      _
    $region31: #{tpu_custom_call.1} parent=1 // pred_check_branch
      %58 = sbr.rel (0) target = $region33
    $region32: #{tpu_custom_call.1} parent=1 // pred_region
      %59 = dma.done [#allocation6], 1024
    $region33: #{tpu_custom_call.1} parent=1 // pred_fallthru
      _
    %v61 = vld [vmem:[#allocation2] sm:$0xff]
    %v62 = vld [vmem:[#allocation5] sm:$0xf]
    %v63 = vld [vmem:[#allocation5 + $0x4] sm:$0xf]
    %v64 = vld [vmem:[#allocation5 + $0x8] sm:$0xf]
    %v65 = vld [vmem:[#allocation5 + $0xc] sm:$0xf]
    %v66 = vld [vmem:[#allocation5 + $0x10] sm:$0xf]
    %v67 = vld [vmem:[#allocation5 + $0x14] sm:$0xf]
    %v68 = vld [vmem:[#allocation5 + $0x18] sm:$0xf]
    %v69 = vld [vmem:[#allocation5 + $0x1c] sm:$0xf]
    %v70 = vld [vmem:[#allocation5 + $0x20] sm:$0xf]
    %v71 = vld [vmem:[#allocation5 + $0x24] sm:$0xf]
    %v72 = vld [vmem:[#allocation5 + $0x28] sm:$0xf]
    %v73 = vld [vmem:[#allocation5 + $0x2c] sm:$0xf]
    %v74 = vld [vmem:[#allocation5 + $0x30] sm:$0xf]
    %v75 = vld [vmem:[#allocation5 + $0x34] sm:$0xf]
    %v76 = vld [vmem:[#allocation5 + $0x38] sm:$0xf]
    %v77 = vld [vmem:[#allocation5 + $0x3c] sm:$0xf]
    %v78 = vld [vmem:[%s2] sm:$0x1]
    %v79 = vpack.c.bf16 %v61, %v61
    %v81 = vlaneseq
    %v82 = vshrl.u32 %v81, 7
    %v83 = vsub.s32 0, %v82
    %v84 = vrot.slane %v78, %v83
    %v102 = vunpack.c.l.b16 %v62
    %v103 = vunpack.c.l.b16 %v63
    %v104 = vunpack.c.l.b16 %v64
    %v105 = vunpack.c.l.b16 %v65
    %v106 = vunpack.c.l.b16 %v66
    %v107 = vunpack.c.l.b16 %v67
    %v108 = vunpack.c.l.b16 %v68
    %v109 = vunpack.c.l.b16 %v69
    %v110 = vunpack.c.l.b16 %v70
    %v111 = vunpack.c.l.b16 %v71
    %v112 = vunpack.c.l.b16 %v72
    %v113 = vunpack.c.l.b16 %v73
    %v114 = vunpack.c.l.b16 %v74
    %v115 = vunpack.c.l.b16 %v75
    %v116 = vunpack.c.l.b16 %v76
    %v117 = vunpack.c.l.b16 %v77
    %v118 = vpack.c.b16 %v103, %v102
    %v119 = vpack.c.b16 %v105, %v104
    %v120 = vpack.c.b16 %v107, %v106
    %v121 = vpack.c.b16 %v109, %v108
    %v122 = vpack.c.b16 %v111, %v110
    %v123 = vpack.c.b16 %v113, %v112
    %v124 = vpack.c.b16 %v115, %v114
    %v125 = vpack.c.b16 %v117, %v116
    %134 = vmatprep.subr.bf16.mxu0 0
    %135 = vmatpush1.bf16.msra.mxu0 %v118
    %136 = vmatprep.subr.bf16.mxu0 0
    %137 = vmatpush1.bf16.msra.mxu0 %v119
    %138 = vmatprep.subr.bf16.mxu0 0
    %139 = vmatpush1.bf16.msra.mxu0 %v120
    %140 = vmatprep.subr.bf16.mxu0 0
    %141 = vmatpush1.bf16.msra.mxu0 %v121
    %142 = vmatprep.subr.bf16.mxu0 0
    %143 = vmatpush1.bf16.msra.mxu0 %v122
    %144 = vmatprep.subr.bf16.mxu0 0
    %145 = vmatpush1.bf16.msra.mxu0 %v123
    %146 = vmatprep.subr.bf16.mxu0 0
    %147 = vmatpush1.bf16.msra.mxu0 %v124
    %148 = vmatprep.subr.bf16.mxu0 0
    %149 = vmatpush1.bf16.msra.mxu0 %v125
    %150 = vmatprep.subr.bf16.mxu0 0
    %151 = vmatpush1.bf16.msra.mxu0 0
    %152 = vmatprep.subr.bf16.mxu0 0
    %153 = vmatpush1.bf16.msra.mxu0 0
    %154 = vmatprep.subr.bf16.mxu0 0
    %155 = vmatpush1.bf16.msra.mxu0 0
    %156 = vmatprep.subr.bf16.mxu0 0
    %157 = vmatpush1.bf16.msra.mxu0 0
    %158 = vmatprep.subr.bf16.mxu0 0
    %159 = vmatpush1.bf16.msra.mxu0 0
    %160 = vmatprep.subr.bf16.mxu0 0
    %161 = vmatpush1.bf16.msra.mxu0 0
    %162 = vmatprep.subr.bf16.mxu0 0
    %163 = vmatpush1.bf16.msra.mxu0 0
    %164 = vmatprep.subr.bf16.mxu0 0
    %165 = vmatpush1.bf16.msra.mxu0 0
    %166 = vmatprep.mubr.bf16.mxu0 0
    %167 = vmatmul.mubr.bf16.gmra.mrb[0].mxu0 %v79
    %v168 = vpop.f32.mrb[0].mxu0
    %v169 = vadd.f32 %v84, %v168
    %v170 = vpop.f32.mrb[0].mxu0
    %v171 = vpop.f32.mrb[0].mxu0
    %v172 = vpop.f32.mrb[0].mxu0
    %173 = vdwg.mxu0
    %v174 = vmax.f32 %v169, 0.0
    %v175 = vadd.f32 %v174, %v61
    %s176 = scalar_lea.vmem [#allocation5], 64
    %v177 = vld [vmem:[%s176] sm:$0xf]
    %v178 = vld [vmem:[%s176 + $0x4] sm:$0xf]
    %v179 = vld [vmem:[%s176 + $0x8] sm:$0xf]
    %v180 = vld [vmem:[%s176 + $0xc] sm:$0xf]
    %v181 = vld [vmem:[%s176 + $0x10] sm:$0xf]
    %v182 = vld [vmem:[%s176 + $0x14] sm:$0xf]
    %v183 = vld [vmem:[%s176 + $0x18] sm:$0xf]
    %v184 = vld [vmem:[%s176 + $0x1c] sm:$0xf]
    %v185 = vld [vmem:[%s176 + $0x20] sm:$0xf]
    %v186 = vld [vmem:[%s176 + $0x24] sm:$0xf]
    %v187 = vld [vmem:[%s176 + $0x28] sm:$0xf]
    %v188 = vld [vmem:[%s176 + $0x2c] sm:$0xf]
    %v189 = vld [vmem:[%s176 + $0x30] sm:$0xf]
    %v190 = vld [vmem:[%s176 + $0x34] sm:$0xf]
    %v191 = vld [vmem:[%s176 + $0x38] sm:$0xf]
    %v192 = vld [vmem:[%s176 + $0x3c] sm:$0xf]
    %s193 = scalar_lea.vmem %s2, 1
    %v194 = vld [vmem:[%s193] sm:$0x1]
    %v195 = vpack.c.bf16 %v175, %v175
    %v197 = vlaneseq
    %v198 = vshrl.u32 %v197, 7
    %v199 = vsub.s32 0, %v198
    %v200 = vrot.slane %v194, %v199
    %v218 = vunpack.c.l.b16 %v177
    %v219 = vunpack.c.l.b16 %v178
    %v220 = vunpack.c.l.b16 %v179
    %v221 = vunpack.c.l.b16 %v180
    %v222 = vunpack.c.l.b16 %v181
    %v223 = vunpack.c.l.b16 %v182
    %v224 = vunpack.c.l.b16 %v183
    %v225 = vunpack.c.l.b16 %v184
    %v226 = vunpack.c.l.b16 %v185
    %v227 = vunpack.c.l.b16 %v186
    %v228 = vunpack.c.l.b16 %v187
    %v229 = vunpack.c.l.b16 %v188
    %v230 = vunpack.c.l.b16 %v189
    %v231 = vunpack.c.l.b16 %v190
    %v232 = vunpack.c.l.b16 %v191
    %v233 = vunpack.c.l.b16 %v192
    %v234 = vpack.c.b16 %v219, %v218
    %v235 = vpack.c.b16 %v221, %v220
    %v236 = vpack.c.b16 %v223, %v222
    %v237 = vpack.c.b16 %v225, %v224
    %v238 = vpack.c.b16 %v227, %v226
    %v239 = vpack.c.b16 %v229, %v228
    %v240 = vpack.c.b16 %v231, %v230
    %v241 = vpack.c.b16 %v233, %v232
    %250 = vmatprep.subr.bf16.mxu0 0
    %251 = vmatpush1.bf16.msra.mxu0 %v234
    %252 = vmatprep.subr.bf16.mxu0 0
    %253 = vmatpush1.bf16.msra.mxu0 %v235
    %254 = vmatprep.subr.bf16.mxu0 0
    %255 = vmatpush1.bf16.msra.mxu0 %v236
    %256 = vmatprep.subr.bf16.mxu0 0
    %257 = vmatpush1.bf16.msra.mxu0 %v237
    %258 = vmatprep.subr.bf16.mxu0 0
    %259 = vmatpush1.bf16.msra.mxu0 %v238
    %260 = vmatprep.subr.bf16.mxu0 0
    %261 = vmatpush1.bf16.msra.mxu0 %v239
    %262 = vmatprep.subr.bf16.mxu0 0
    %263 = vmatpush1.bf16.msra.mxu0 %v240
    %264 = vmatprep.subr.bf16.mxu0 0
    %265 = vmatpush1.bf16.msra.mxu0 %v241
    %266 = vmatprep.subr.bf16.mxu0 0
    %267 = vmatpush1.bf16.msra.mxu0 0
    %268 = vmatprep.subr.bf16.mxu0 0
    %269 = vmatpush1.bf16.msra.mxu0 0
    %270 = vmatprep.subr.bf16.mxu0 0
    %271 = vmatpush1.bf16.msra.mxu0 0
    %272 = vmatprep.subr.bf16.mxu0 0
    %273 = vmatpush1.bf16.msra.mxu0 0
    %274 = vmatprep.subr.bf16.mxu0 0
    %275 = vmatpush1.bf16.msra.mxu0 0
    %276 = vmatprep.subr.bf16.mxu0 0
    %277 = vmatpush1.bf16.msra.mxu0 0
    %278 = vmatprep.subr.bf16.mxu0 0
    %279 = vmatpush1.bf16.msra.mxu0 0
    %280 = vmatprep.subr.bf16.mxu0 0
    %281 = vmatpush1.bf16.msra.mxu0 0
    %282 = vmatprep.mubr.bf16.mxu0 0
    %283 = vmatmul.mubr.bf16.gmra.mrb[0].mxu0 %v195
    %v284 = vpop.f32.mrb[0].mxu0
    %v285 = vadd.f32 %v200, %v284
    %v286 = vpop.f32.mrb[0].mxu0
    %v287 = vpop.f32.mrb[0].mxu0
    %v288 = vpop.f32.mrb[0].mxu0
    %289 = vdwg.mxu0
    %v290 = vmax.f32 %v285, 0.0
    %v291 = vadd.f32 %v290, %v175
    %v292 = vpack.c.bf16 %v291, %v291
    %v293 = vld [vmem:[#allocation7] sm:$0xf]
    %v294 = vld [vmem:[#allocation7 + $0x4] sm:$0xf]
    %v295 = vld [vmem:[#allocation7 + $0x8] sm:$0xf]
    %v296 = vld [vmem:[#allocation7 + $0xc] sm:$0xf]
    %v297 = vld [vmem:[#allocation7 + $0x10] sm:$0xf]
    %v298 = vld [vmem:[#allocation7 + $0x14] sm:$0xf]
    %v299 = vld [vmem:[#allocation7 + $0x18] sm:$0xf]
    %v300 = vld [vmem:[#allocation7 + $0x1c] sm:$0xf]
    %v301 = vld [vmem:[#allocation7 + $0x20] sm:$0xf]
    %v302 = vld [vmem:[#allocation7 + $0x24] sm:$0xf]
    %v303 = vld [vmem:[#allocation7 + $0x28] sm:$0xf]
    %v304 = vld [vmem:[#allocation7 + $0x2c] sm:$0xf]
    %v305 = vld [vmem:[#allocation7 + $0x30] sm:$0xf]
    %v306 = vld [vmem:[#allocation7 + $0x34] sm:$0xf]
    %v307 = vld [vmem:[#allocation7 + $0x38] sm:$0xf]
    %v308 = vld [vmem:[#allocation7 + $0x3c] sm:$0xf]
    %v309 = vld [vmem:[%s4] sm:$0x1]
    %v311 = vlaneseq
    %v312 = vshrl.u32 %v311, 7
    %v313 = vsub.s32 0, %v312
    %v314 = vrot.slane %v309, %v313
    %v332 = vunpack.c.l.b16 %v293
    %v333 = vunpack.c.l.b16 %v294
    %v334 = vunpack.c.l.b16 %v295
    %v335 = vunpack.c.l.b16 %v296
    %v336 = vunpack.c.l.b16 %v297
    %v337 = vunpack.c.l.b16 %v298
    %v338 = vunpack.c.l.b16 %v299
    %v339 = vunpack.c.l.b16 %v300
    %v340 = vunpack.c.l.b16 %v301
    %v341 = vunpack.c.l.b16 %v302
    %v342 = vunpack.c.l.b16 %v303
    %v343 = vunpack.c.l.b16 %v304
    %v344 = vunpack.c.l.b16 %v305
    %v345 = vunpack.c.l.b16 %v306
    %v346 = vunpack.c.l.b16 %v307
    %v347 = vunpack.c.l.b16 %v308
    %v348 = vpack.c.b16 %v333, %v332
    %v349 = vpack.c.b16 %v335, %v334
    %v350 = vpack.c.b16 %v337, %v336
    %v351 = vpack.c.b16 %v339, %v338
    %v352 = vpack.c.b16 %v341, %v340
    %v353 = vpack.c.b16 %v343, %v342
    %v354 = vpack.c.b16 %v345, %v344
    %v355 = vpack.c.b16 %v347, %v346
    %364 = vmatprep.subr.bf16.mxu0 0
    %365 = vmatpush1.bf16.msra.mxu0 %v348
    %366 = vmatprep.subr.bf16.mxu0 0
    %367 = vmatpush1.bf16.msra.mxu0 %v349
    %368 = vmatprep.subr.bf16.mxu0 0
    %369 = vmatpush1.bf16.msra.mxu0 %v350
    %370 = vmatprep.subr.bf16.mxu0 0
    %371 = vmatpush1.bf16.msra.mxu0 %v351
    %372 = vmatprep.subr.bf16.mxu0 0
    %373 = vmatpush1.bf16.msra.mxu0 %v352
    %374 = vmatprep.subr.bf16.mxu0 0
    %375 = vmatpush1.bf16.msra.mxu0 %v353
    %376 = vmatprep.subr.bf16.mxu0 0
    %377 = vmatpush1.bf16.msra.mxu0 %v354
    %378 = vmatprep.subr.bf16.mxu0 0
    %379 = vmatpush1.bf16.msra.mxu0 %v355
    %380 = vmatprep.subr.bf16.mxu0 0
    %381 = vmatpush1.bf16.msra.mxu0 0
    %382 = vmatprep.subr.bf16.mxu0 0
    %383 = vmatpush1.bf16.msra.mxu0 0
    %384 = vmatprep.subr.bf16.mxu0 0
    %385 = vmatpush1.bf16.msra.mxu0 0
    %386 = vmatprep.subr.bf16.mxu0 0
    %387 = vmatpush1.bf16.msra.mxu0 0
    %388 = vmatprep.subr.bf16.mxu0 0
    %389 = vmatpush1.bf16.msra.mxu0 0
    %390 = vmatprep.subr.bf16.mxu0 0
    %391 = vmatpush1.bf16.msra.mxu0 0
    %392 = vmatprep.subr.bf16.mxu0 0
    %393 = vmatpush1.bf16.msra.mxu0 0
    %394 = vmatprep.subr.bf16.mxu0 0
    %395 = vmatpush1.bf16.msra.mxu0 0
    %396 = vmatprep.mubr.bf16.mxu0 0
    %397 = vmatmul.mubr.bf16.gmra.mrb[0].mxu0 %v292
    %v398 = vpop.f32.mrb[0].mxu0
    %v399 = vadd.f32 %v314, %v398
    %v400 = vpop.f32.mrb[0].mxu0
    %v401 = vpop.f32.mrb[0].mxu0
    %v402 = vpop.f32.mrb[0].mxu0
    %403 = vdwg.mxu0
    %404 = vst [vmem:[#allocation8] sm:$0xff] %v399
    // Predicated region
    $region34: #{tpu_custom_call.1} parent=1 // pred_check
      _
    $region35: #{tpu_custom_call.1} parent=1 // pred_check_branch
      %406 = sbr.rel (0) target = $region37
    $region36: #{tpu_custom_call.1} parent=1 // pred_region
      %s408 = ssub.s32 128, 128
      %409 = vsyncadd [#allocation4], %s408
      %s411 = sshll.u32 [#allocation8], 4
      %s412 = int_to_ptr.vmem [resolvable:$true] %s411
      %414 = dma.vmem_to_hbm [thread:$0]  %s412, 128, %s5, [#allocation4]
    $region37: #{tpu_custom_call.1} parent=1 // pred_fallthru
      _
    // Predicated region
    $region38: #{tpu_custom_call.1} parent=1 // pred_check
      _
    $region39: #{tpu_custom_call.1} parent=1 // pred_check_branch
      %416 = sbr.rel (0) target = $region41
    $region40: #{tpu_custom_call.1} parent=1 // pred_region
      %417 = dma.done [#allocation4], 128
    $region41: #{tpu_custom_call.1} parent=1 // pred_fallthru
      _
    %418 = vsyncpa [#allocation3], 1
    %419 = vsyncpa [#allocation6], 1
    %420 = vsyncpa [#allocation4], 1

// kernel: tpu_custom_call.1
$region0: #{tpu_custom_call.1}
  #allocation0 [shape = 'u32[]', space=smem, size = 0x4, offset = 0x4, fixed_abs, tag = 'smem constant byte address 0x4 - core index']
  #allocation1 [shape = 'u32[144,128]{1,0:T(1,128)}', space=vmem, size = 0x12000, scoped, tag = 'internal scratch']
  %s0 = inlined_call_operand.hbm [shape: f32[8,128], index: 0, kind: input, shape index: {}]
  %s1 = inlined_call_operand.hbm [shape: bf16[2,128,128], index: 1, kind: input, shape index: {}]
  %s2 = inlined_call_operand.vmem [shape: f32[2,1,128], index: 2, kind: input, shape index: {}]
  %s3 = inlined_call_operand.hbm [shape: bf16[128,128], index: 3, kind: input, shape index: {}]
  %s4 = inlined_call_operand.vmem [shape: f32[1,128], index: 4, kind: input, shape index: {}]
  %s5 = inlined_call_operand.hbm [shape: f32[8,128], index: 5, kind: output, shape index: {}]
  %s6 = sld [smem:[#allocation0]]
  $region42: #{tpu_custom_call.1} parent=0
    _
  %s8 = ssub.s32 1, %s6
  %s9 = scalar_select 0, %s8, %s6
  $region1: #{tpu_custom_call.1} parent=0
    #allocation2 [shape = 'u8[4096]{0}', space=vmem, size = 0x1000, scoped, tag = 'input window, operand 0, single buffered']
    #allocation3 [shape = 's32[1]{0}', space=sflag, size = 0x4, scoped, tag = 'scoped memory for tpu_custom_call.1']
    #allocation4 [shape = 's32[1]{0}', space=sflag, size = 0x4, scoped, tag = 'scoped memory for tpu_custom_call.1']
    #allocation5 [shape = 'u8[65536]{0}', space=vmem, size = 0x10000, scoped, tag = 'input window, operand 1, single buffered']
    #allocation6 [shape = 's32[1]{0}', space=sflag, size = 0x4, scoped, tag = 'scoped memory for tpu_custom_call.1']
    #allocation7 [shape = 'u8[32768]{0}', space=vmem, size = 0x8000, scoped, tag = 'input window, operand 3, single buffered']
    #allocation8 [shape = 'u8[4096]{0}', space=vmem, size = 0x1000, scoped, tag = 'output window, operand 0, single buffered']
    %10 = vsyncpa [#allocation3], 0
    %11 = vsyncpa [#allocation6], 0
    %12 = vsyncpa [#allocation4], 0
    // Predicated region
    $region2: #{tpu_custom_call.1} parent=1 // pred_check
      _
    $region3: #{tpu_custom_call.1} parent=1 // pred_check_branch
      %14 = sbr.rel (0) target = $region5
    $region4: #{tpu_custom_call.1} parent=1 // pred_region
      %s16 = ssub.s32 128, 128
      %17 = vsyncadd [#allocation3], %s16
      %s19 = sshll.u32 [#allocation2], 4
      %s20 = int_to_ptr.vmem [resolvable:$true] %s19
      %22 = dma.hbm_to_vmem [thread:$0]  %s0, 128, %s20, [#allocation3]
    $region5: #{tpu_custom_call.1} parent=1 // pred_fallthru
      _
    // Predicated region
    $region6: #{tpu_custom_call.1} parent=1 // pred_check
      _
    $region7: #{tpu_custom_call.1} parent=1 // pred_check_branch
      %24 = sbr.rel (0) target = $region9
    $region8: #{tpu_custom_call.1} parent=1 // pred_region
      %s26 = ssub.s32 2048, 2048
      %27 = vsyncadd [#allocation6], %s26
      %s28 = sshll.u32 [#allocation5], 4
      %s29 = int_to_ptr.vmem [resolvable:$true] %s28
      %34 = dma.hbm_to_vmem [thread:$0]  %s1, 2048, %s29, [#allocation6], 64, 64, 4
    $region9: #{tpu_custom_call.1} parent=1 // pred_fallthru
      _
    // Predicated region
    $region10: #{tpu_custom_call.1} parent=1 // pred_check
      _
    $region11: #{tpu_custom_call.1} parent=1 // pred_check_branch
      %36 = sbr.rel (0) target = $region13
    $region12: #{tpu_custom_call.1} parent=1 // pred_region
      _
    $region13: #{tpu_custom_call.1} parent=1 // pred_fallthru
      _
    // Predicated region
    $region14: #{tpu_custom_call.1} parent=1 // pred_check
      _
    $region15: #{tpu_custom_call.1} parent=1 // pred_check_branch
      %38 = sbr.rel (0) target = $region17
    $region16: #{tpu_custom_call.1} parent=1 // pred_region
      %s40 = ssub.s32 1024, 1024
      %41 = vsyncadd [#allocation6], %s40
      %s42 = sshll.u32 [#allocation7], 4
      %s43 = int_to_ptr.vmem [resolvable:$true] %s42
      %48 = dma.hbm_to_vmem [thread:$0]  %s3, 1024, %s43, [#allocation6], 64, 64, 4
    $region17: #{tpu_custom_call.1} parent=1 // pred_fallthru
      _
    // Predicated region
    $region18: #{tpu_custom_call.1} parent=1 // pred_check
      _
    $region19: #{tpu_custom_call.1} parent=1 // pred_check_branch
      %50 = sbr.rel (0) target = $region21
    $region20: #{tpu_custom_call.1} parent=1 // pred_region
      _
    $region21: #{tpu_custom_call.1} parent=1 // pred_fallthru
      _
    // Predicated region
    $region22: #{tpu_custom_call.1} parent=1 // pred_check
      _
    $region23: #{tpu_custom_call.1} parent=1 // pred_check_branch
      %52 = sbr.rel (0) target = $region25
    $region24: #{tpu_custom_call.1} parent=1 // pred_region
      %53 = dma.done [#allocation3], 128
    $region25: #{tpu_custom_call.1} parent=1 // pred_fallthru
      _
    // Predicated region
    $region26: #{tpu_custom_call.1} parent=1 // pred_check
      _
    $region27: #{tpu_custom_call.1} parent=1 // pred_check_branch
      %55 = sbr.rel (0) target = $region29
    $region28: #{tpu_custom_call.1} parent=1 // pred_region
      %56 = dma.done [#allocation6], 2048
    $region29: #{tpu_custom_call.1} parent=1 // pred_fallthru
      _
    // Predicated region
    $region30: #{tpu_custom_call.1} parent=1 // pred_check
      _
    $region31: #{tpu_custom_call.1} parent=1 // pred_check_branch
      %58 = sbr.rel (0) target = $region33
    $region32: #{tpu_custom_call.1} parent=1 // pred_region
      %59 = dma.done [#allocation6], 1024
    $region33: #{tpu_custom_call.1} parent=1 // pred_fallthru
      _
    %v61 = vld [vmem:[#allocation2] sm:$0xff]
    %v62 = vld [vmem:[#allocation5] sm:$0xf]
    %v63 = vld [vmem:[#allocation5 + $0x4] sm:$0xf]
    %v64 = vld [vmem:[#allocation5 + $0x8] sm:$0xf]
    %v65 = vld [vmem:[#allocation5 + $0xc] sm:$0xf]
    %v66 = vld [vmem:[#allocation5 + $0x10] sm:$0xf]
    %v67 = vld [vmem:[#allocation5 + $0x14] sm:$0xf]
    %v68 = vld [vmem:[#allocation5 + $0x18] sm:$0xf]
    %v69 = vld [vmem:[#allocation5 + $0x1c] sm:$0xf]
    %v70 = vld [vmem:[#allocation5 + $0x20] sm:$0xf]
    %v71 = vld [vmem:[#allocation5 + $0x24] sm:$0xf]
    %v72 = vld [vmem:[#allocation5 + $0x28] sm:$0xf]
    %v73 = vld [vmem:[#allocation5 + $0x2c] sm:$0xf]
    %v74 = vld [vmem:[#allocation5 + $0x30] sm:$0xf]
    %v75 = vld [vmem:[#allocation5 + $0x34] sm:$0xf]
    %v76 = vld [vmem:[#allocation5 + $0x38] sm:$0xf]
    %v77 = vld [vmem:[#allocation5 + $0x3c] sm:$0xf]
    %v78 = vld [vmem:[%s2] sm:$0x1]
    %v79 = vpack.c.bf16 %v61, %v61
    %v81 = vlaneseq
    %v82 = vshrl.u32 %v81, 7
    %v83 = vsub.s32 0, %v82
    %v84 = vrot.slane %v78, %v83
    %v102 = vunpack.c.l.b16 %v62
    %v103 = vunpack.c.l.b16 %v63
    %v104 = vunpack.c.l.b16 %v64
    %v105 = vunpack.c.l.b16 %v65
    %v106 = vunpack.c.l.b16 %v66
    %v107 = vunpack.c.l.b16 %v67
    %v108 = vunpack.c.l.b16 %v68
    %v109 = vunpack.c.l.b16 %v69
    %v110 = vunpack.c.l.b16 %v70
    %v111 = vunpack.c.l.b16 %v71
    %v112 = vunpack.c.l.b16 %v72
    %v113 = vunpack.c.l.b16 %v73
    %v114 = vunpack.c.l.b16 %v74
    %v115 = vunpack.c.l.b16 %v75
    %v116 = vunpack.c.l.b16 %v76
    %v117 = vunpack.c.l.b16 %v77
    %v118 = vpack.c.b16 %v103, %v102
    %v119 = vpack.c.b16 %v105, %v104
    %v120 = vpack.c.b16 %v107, %v106
    %v121 = vpack.c.b16 %v109, %v108
    %v122 = vpack.c.b16 %v111, %v110
    %v123 = vpack.c.b16 %v113, %v112
    %v124 = vpack.c.b16 %v115, %v114
    %v125 = vpack.c.b16 %v117, %v116
    %134 = vmatprep.subr.bf16.mxu0 0
    %135 = vmatpush1.bf16.msra.mxu0 %v118
    %136 = vmatprep.subr.bf16.mxu0 0
    %137 = vmatpush1.bf16.msra.mxu0 %v119
    %138 = vmatprep.subr.bf16.mxu0 0
    %139 = vmatpush1.bf16.msra.mxu0 %v120
    %140 = vmatprep.subr.bf16.mxu0 0
    %141 = vmatpush1.bf16.msra.mxu0 %v121
    %142 = vmatprep.subr.bf16.mxu0 0
    %143 = vmatpush1.bf16.msra.mxu0 %v122
    %144 = vmatprep.subr.bf16.mxu0 0
    %145 = vmatpush1.bf16.msra.mxu0 %v123
    %146 = vmatprep.subr.bf16.mxu0 0
    %147 = vmatpush1.bf16.msra.mxu0 %v124
    %148 = vmatprep.subr.bf16.mxu0 0
    %149 = vmatpush1.bf16.msra.mxu0 %v125
    %150 = vmatprep.subr.bf16.mxu0 0
    %151 = vmatpush1.bf16.msra.mxu0 0
    %152 = vmatprep.subr.bf16.mxu0 0
    %153 = vmatpush1.bf16.msra.mxu0 0
    %154 = vmatprep.subr.bf16.mxu0 0
    %155 = vmatpush1.bf16.msra.mxu0 0
    %156 = vmatprep.subr.bf16.mxu0 0
    %157 = vmatpush1.bf16.msra.mxu0 0
    %158 = vmatprep.subr.bf16.mxu0 0
    %159 = vmatpush1.bf16.msra.mxu0 0
    %160 = vmatprep.subr.bf16.mxu0 0
    %161 = vmatpush1.bf16.msra.mxu0 0
    %162 = vmatprep.subr.bf16.mxu0 0
    %163 = vmatpush1.bf16.msra.mxu0 0
    %164 = vmatprep.subr.bf16.mxu0 0
    %165 = vmatpush1.bf16.msra.mxu0 0
    %166 = vmatprep.mubr.bf16.mxu0 0
    %167 = vmatmul.mubr.bf16.gmra.mrb[0].mxu0 %v79
    %v168 = vpop.f32.mrb[0].mxu0
    %v169 = vadd.f32 %v84, %v168
    %v170 = vpop.f32.mrb[0].mxu0
    %v171 = vpop.f32.mrb[0].mxu0
    %v172 = vpop.f32.mrb[0].mxu0
    %173 = vdwg.mxu0
    %v174 = vmax.f32 %v169, 0.0
    %v175 = vadd.f32 %v174, %v61
    %s176 = scalar_lea.vmem [#allocation5], 64
    %v177 = vld [vmem:[%s176] sm:$0xf]
    %v178 = vld [vmem:[%s176 + $0x4] sm:$0xf]
    %v179 = vld [vmem:[%s176 + $0x8] sm:$0xf]
    %v180 = vld [vmem:[%s176 + $0xc] sm:$0xf]
    %v181 = vld [vmem:[%s176 + $0x10] sm:$0xf]
    %v182 = vld [vmem:[%s176 + $0x14] sm:$0xf]
    %v183 = vld [vmem:[%s176 + $0x18] sm:$0xf]
    %v184 = vld [vmem:[%s176 + $0x1c] sm:$0xf]
    %v185 = vld [vmem:[%s176 + $0x20] sm:$0xf]
    %v186 = vld [vmem:[%s176 + $0x24] sm:$0xf]
    %v187 = vld [vmem:[%s176 + $0x28] sm:$0xf]
    %v188 = vld [vmem:[%s176 + $0x2c] sm:$0xf]
    %v189 = vld [vmem:[%s176 + $0x30] sm:$0xf]
    %v190 = vld [vmem:[%s176 + $0x34] sm:$0xf]
    %v191 = vld [vmem:[%s176 + $0x38] sm:$0xf]
    %v192 = vld [vmem:[%s176 + $0x3c] sm:$0xf]
    %s193 = scalar_lea.vmem %s2, 1
    %v194 = vld [vmem:[%s193] sm:$0x1]
    %v195 = vpack.c.bf16 %v175, %v175
    %v197 = vlaneseq
    %v198 = vshrl.u32 %v197, 7
    %v199 = vsub.s32 0, %v198
    %v200 = vrot.slane %v194, %v199
    %v218 = vunpack.c.l.b16 %v177
    %v219 = vunpack.c.l.b16 %v178
    %v220 = vunpack.c.l.b16 %v179
    %v221 = vunpack.c.l.b16 %v180
    %v222 = vunpack.c.l.b16 %v181
    %v223 = vunpack.c.l.b16 %v182
    %v224 = vunpack.c.l.b16 %v183
    %v225 = vunpack.c.l.b16 %v184
    %v226 = vunpack.c.l.b16 %v185
    %v227 = vunpack.c.l.b16 %v186
    %v228 = vunpack.c.l.b16 %v187
    %v229 = vunpack.c.l.b16 %v188
    %v230 = vunpack.c.l.b16 %v189
    %v231 = vunpack.c.l.b16 %v190
    %v232 = vunpack.c.l.b16 %v191
    %v233 = vunpack.c.l.b16 %v192
    %v234 = vpack.c.b16 %v219, %v218
    %v235 = vpack.c.b16 %v221, %v220
    %v236 = vpack.c.b16 %v223, %v222
    %v237 = vpack.c.b16 %v225, %v224
    %v238 = vpack.c.b16 %v227, %v226
    %v239 = vpack.c.b16 %v229, %v228
    %v240 = vpack.c.b16 %v231, %v230
    %v241 = vpack.c.b16 %v233, %v232
    %250 = vmatprep.subr.bf16.mxu0 0
    %251 = vmatpush1.bf16.msra.mxu0 %v234
    %252 = vmatprep.subr.bf16.mxu0 0
    %253 = vmatpush1.bf16.msra.mxu0 %v235
    %254 = vmatprep.subr.bf16.mxu0 0
    %255 = vmatpush1.bf16.msra.mxu0 %v236
    %256 = vmatprep.subr.bf16.mxu0 0
    %257 = vmatpush1.bf16.msra.mxu0 %v237
    %258 = vmatprep.subr.bf16.mxu0 0
    %259 = vmatpush1.bf16.msra.mxu0 %v238
    %260 = vmatprep.subr.bf16.mxu0 0
    %261 = vmatpush1.bf16.msra.mxu0 %v239
    %262 = vmatprep.subr.bf16.mxu0 0
    %263 = vmatpush1.bf16.msra.mxu0 %v240
    %264 = vmatprep.subr.bf16.mxu0 0
    %265 = vmatpush1.bf16.msra.mxu0 %v241
    %266 = vmatprep.subr.bf16.mxu0 0
    %267 = vmatpush1.bf16.msra.mxu0 0
    %268 = vmatprep.subr.bf16.mxu0 0
    %269 = vmatpush1.bf16.msra.mxu0 0
    %270 = vmatprep.subr.bf16.mxu0 0
    %271 = vmatpush1.bf16.msra.mxu0 0
    %272 = vmatprep.subr.bf16.mxu0 0
    %273 = vmatpush1.bf16.msra.mxu0 0
    %274 = vmatprep.subr.bf16.mxu0 0
    %275 = vmatpush1.bf16.msra.mxu0 0
    %276 = vmatprep.subr.bf16.mxu0 0
    %277 = vmatpush1.bf16.msra.mxu0 0
    %278 = vmatprep.subr.bf16.mxu0 0
    %279 = vmatpush1.bf16.msra.mxu0 0
    %280 = vmatprep.subr.bf16.mxu0 0
    %281 = vmatpush1.bf16.msra.mxu0 0
    %282 = vmatprep.mubr.bf16.mxu0 0
    %283 = vmatmul.mubr.bf16.gmra.mrb[0].mxu0 %v195
    %v284 = vpop.f32.mrb[0].mxu0
    %v285 = vadd.f32 %v200, %v284
    %v286 = vpop.f32.mrb[0].mxu0
    %v287 = vpop.f32.mrb[0].mxu0
    %v288 = vpop.f32.mrb[0].mxu0
    %289 = vdwg.mxu0
    %v290 = vmax.f32 %v285, 0.0
    %v291 = vadd.f32 %v290, %v175
    %v292 = vpack.c.bf16 %v291, %v291
    %v293 = vld [vmem:[#allocation7] sm:$0xf]
    %v294 = vld [vmem:[#allocation7 + $0x4] sm:$0xf]
    %v295 = vld [vmem:[#allocation7 + $0x8] sm:$0xf]
    %v296 = vld [vmem:[#allocation7 + $0xc] sm:$0xf]
    %v297 = vld [vmem:[#allocation7 + $0x10] sm:$0xf]
    %v298 = vld [vmem:[#allocation7 + $0x14] sm:$0xf]
    %v299 = vld [vmem:[#allocation7 + $0x18] sm:$0xf]
    %v300 = vld [vmem:[#allocation7 + $0x1c] sm:$0xf]
    %v301 = vld [vmem:[#allocation7 + $0x20] sm:$0xf]
    %v302 = vld [vmem:[#allocation7 + $0x24] sm:$0xf]
    %v303 = vld [vmem:[#allocation7 + $0x28] sm:$0xf]
    %v304 = vld [vmem:[#allocation7 + $0x2c] sm:$0xf]
    %v305 = vld [vmem:[#allocation7 + $0x30] sm:$0xf]
    %v306 = vld [vmem:[#allocation7 + $0x34] sm:$0xf]
    %v307 = vld [vmem:[#allocation7 + $0x38] sm:$0xf]
    %v308 = vld [vmem:[#allocation7 + $0x3c] sm:$0xf]
    %v309 = vld [vmem:[%s4] sm:$0x1]
    %v311 = vlaneseq
    %v312 = vshrl.u32 %v311, 7
    %v313 = vsub.s32 0, %v312
    %v314 = vrot.slane %v309, %v313
    %v332 = vunpack.c.l.b16 %v293
    %v333 = vunpack.c.l.b16 %v294
    %v334 = vunpack.c.l.b16 %v295
    %v335 = vunpack.c.l.b16 %v296
    %v336 = vunpack.c.l.b16 %v297
    %v337 = vunpack.c.l.b16 %v298
    %v338 = vunpack.c.l.b16 %v299
    %v339 = vunpack.c.l.b16 %v300
    %v340 = vunpack.c.l.b16 %v301
    %v341 = vunpack.c.l.b16 %v302
    %v342 = vunpack.c.l.b16 %v303
    %v343 = vunpack.c.l.b16 %v304
    %v344 = vunpack.c.l.b16 %v305
    %v345 = vunpack.c.l.b16 %v306
    %v346 = vunpack.c.l.b16 %v307
    %v347 = vunpack.c.l.b16 %v308
    %v348 = vpack.c.b16 %v333, %v332
    %v349 = vpack.c.b16 %v335, %v334
    %v350 = vpack.c.b16 %v337, %v336
    %v351 = vpack.c.b16 %v339, %v338
    %v352 = vpack.c.b16 %v341, %v340
    %v353 = vpack.c.b16 %v343, %v342
    %v354 = vpack.c.b16 %v345, %v344
    %v355 = vpack.c.b16 %v347, %v346
    %364 = vmatprep.subr.bf16.mxu0 0
    %365 = vmatpush1.bf16.msra.mxu0 %v348
    %366 = vmatprep.subr.bf16.mxu0 0
    %367 = vmatpush1.bf16.msra.mxu0 %v349
    %368 = vmatprep.subr.bf16.mxu0 0
    %369 = vmatpush1.bf16.msra.mxu0 %v350
    %370 = vmatprep.subr.bf16.mxu0 0
    %371 = vmatpush1.bf16.msra.mxu0 %v351
    %372 = vmatprep.subr.bf16.mxu0 0
    %373 = vmatpush1.bf16.msra.mxu0 %v352
    %374 = vmatprep.subr.bf16.mxu0 0
    %375 = vmatpush1.bf16.msra.mxu0 %v353
    %376 = vmatprep.subr.bf16.mxu0 0
    %377 = vmatpush1.bf16.msra.mxu0 %v354
    %378 = vmatprep.subr.bf16.mxu0 0
    %379 = vmatpush1.bf16.msra.mxu0 %v355
    %380 = vmatprep.subr.bf16.mxu0 0
    %381 = vmatpush1.bf16.msra.mxu0 0
    %382 = vmatprep.subr.bf16.mxu0 0
    %383 = vmatpush1.bf16.msra.mxu0 0
    %384 = vmatprep.subr.bf16.mxu0 0
    %385 = vmatpush1.bf16.msra.mxu0 0
    %386 = vmatprep.subr.bf16.mxu0 0
    %387 = vmatpush1.bf16.msra.mxu0 0
    %388 = vmatprep.subr.bf16.mxu0 0
    %389 = vmatpush1.bf16.msra.mxu0 0
    %390 = vmatprep.subr.bf16.mxu0 0
    %391 = vmatpush1.bf16.msra.mxu0 0
    %392 = vmatprep.subr.bf16.mxu0 0
    %393 = vmatpush1.bf16.msra.mxu0 0
    %394 = vmatprep.subr.bf16.mxu0 0
    %395 = vmatpush1.bf16.msra.mxu0 0
    %396 = vmatprep.mubr.bf16.mxu0 0
    %397 = vmatmul.mubr.bf16.gmra.mrb[0].mxu0 %v292
    %v398 = vpop.f32.mrb[0].mxu0
    %v399 = vadd.f32 %v314, %v398
    %v400 = vpop.f32.mrb[0].mxu0
    %v401 = vpop.f32.mrb[0].mxu0
    %v402 = vpop.f32.mrb[0].mxu0
    %403 = vdwg.mxu0
    %404 = vst [vmem:[#allocation8] sm:$0xff] %v399
    // Predicated region
    $region34: #{tpu_custom_call.1} parent=1 // pred_check
      _
    $region35: #{tpu_custom_call.1} parent=1 // pred_check_branch
      %406 = sbr.rel (0) target = $region37
    $region36: #{tpu_custom_call.1} parent=1 // pred_region
      %s408 = ssub.s32 128, 128
      %409 = vsyncadd [#allocation4], %s408
      %s411 = sshll.u32 [#allocation8], 4
      %s412 = int_to_ptr.vmem [resolvable:$true] %s411
      %414 = dma.vmem_to_hbm [thread:$0]  %s412, 128, %s5, [#allocation4]
    $region37: #{tpu_custom_call.1} parent=1 // pred_fallthru
      _
    // Predicated region
    $region38: #{tpu_custom_call.1} parent=1 // pred_check
      _
    $region39: #{tpu_custom_call.1} parent=1 // pred_check_branch
      %416 = sbr.rel (0) target = $region41
    $region40: #{tpu_custom_call.1} parent=1 // pred_region
      %417 = dma.done [#allocation4], 128
    $region41: #{tpu_custom_call.1} parent=1 // pred_fallthru
      _
    %418 = vsyncpa [#allocation3], 1
    %419 = vsyncpa [#allocation6], 1
    %420 = vsyncpa [#allocation4], 1

</llo_original>
